<compile_context>
chip_gen: v7x
topology: tpu7x:2x2x1
jax: 0.10.0
libtpu: 0.0.40
codegen_flags: <defaults>
</compile_context>

<pallas_src>
import functools

import jax
import jax.numpy as jnp
import numpy as np
from jax.experimental import pallas as pl
from jax.experimental.pallas import tpu as pltpu

LANE = 128


def _round_up(x, m):
    return (x + m - 1) // m * m


def _gcn_kernel(adj_ref, xw_ref, b_ref, o_ref, acc_ref, *, tile_k):
    k = pl.program_id(1)

    @pl.when(k == 0)
    def _():
        acc_ref[...] = jnp.zeros_like(acc_ref)

    # A tile stored as int8 (0/1 exact); upcast to bf16 just before the MXU matmul.
    a = adj_ref[...].astype(jnp.bfloat16)
    # XW is VMEM-resident; slice this K tile locally (aligned dynamic slice).
    start = pl.multiple_of(k * tile_k, LANE)
    xw = xw_ref[pl.ds(start, tile_k), :]
    # Message passing + sum reduce over this K tile (bf16 in, f32 accumulate).
    acc_ref[...] += jnp.dot(a, xw, preferred_element_type=jnp.float32)

    @pl.when(k == pl.num_programs(1) - 1)
    def _():
        # NodeApplyModule epilogue: bias + ReLU (the linear was reassociated into XW).
        o_ref[...] = jnp.maximum(acc_ref[...] + b_ref[...], 0.0).astype(o_ref.dtype)


def gcn_prepare(adj, x, weight, bias, *, tile_m=512, tile_k=1024):
    """One-time preprocessing, hoisted out of the per-forward path.

    adj:    [N, N]  A[dst, src] = 1 per edge src -> dst (0/1 valued)
    x:      [N, n_in] node features
    weight: [n_out, n_in] (PyTorch nn.Linear layout), bias: [n_out]

    Returns (adj_p int8 padded, xw_p bf16 padded, b_p f32 padded, geom dict).
    """
    N = adj.shape[0]
    n_out = weight.shape[0]

    tile_m = min(_round_up(tile_m, LANE), _round_up(N, LANE))
    tile_k = min(_round_up(tile_k, LANE), _round_up(N, LANE))
    n_pad_m = _round_up(N, tile_m)
    n_pad_k = _round_up(N, tile_k)
    f_out = _round_up(n_out, LANE)

    # Adjacency: pad + store as int8 (exact for 0/1) -> half the HBM bytes of bf16.
    adj_p = jnp.zeros((n_pad_m, n_pad_k), jnp.int8).at[:N, :N].set(adj.astype(jnp.int8))

    # Reassociate the linear: XW = X @ W^T (highest-precision f32), then bf16 for the MXU.
    xw = jnp.dot(x.astype(jnp.float32),
                 jnp.transpose(weight).astype(jnp.float32),
                 precision=jax.lax.Precision.HIGHEST)
    xw_p = jnp.zeros((n_pad_k, f_out), jnp.bfloat16).at[:N, :n_out].set(
        xw.astype(jnp.bfloat16))

    b_p = jnp.zeros((1, f_out), jnp.float32).at[:, :n_out].set(
        bias.reshape(1, n_out).astype(jnp.float32))

    geom = dict(N=N, n_out=n_out, tile_m=tile_m, tile_k=tile_k,
                n_pad_m=n_pad_m, n_pad_k=n_pad_k, f_out=f_out)
    return adj_p, xw_p, b_p, geom


def gcn_forward(adj_p, xw_p, b_p, geom, *, out_dtype=jnp.float32):
    N = geom["N"]
    n_out = geom["n_out"]
    tile_m, tile_k = geom["tile_m"], geom["tile_k"]
    n_pad_m, n_pad_k = geom["n_pad_m"], geom["n_pad_k"]
    f_out = geom["f_out"]

    grid = (n_pad_m // tile_m, n_pad_k // tile_k)
    out_bytes = jnp.dtype(out_dtype).itemsize

    # VMEM budget: double-buffered A & out, resident XW (counted x2 conservatively),
    # f32 accumulator scratch, tiny bias.  Cap at 48 MiB (safe on v7x's 64 MiB VMEM).
    vmem_est = (2 * tile_m * tile_k * 1
                + 2 * n_pad_k * f_out * 2
                + 2 * tile_m * f_out * out_bytes
                + tile_m * f_out * 4
                + 2 * f_out * 4)
    vmem_limit = int(min(max(2 * vmem_est, 32 * 2**20), 48 * 2**20))

    flops = 2 * n_pad_m * n_pad_k * f_out
    bytes_accessed = (adj_p.size * 1          # A, int8, read once
                      + xw_p.size * 2         # XW, resident, read once
                      + b_p.size * 4
                      + n_pad_m * f_out * out_bytes)
    cost = pl.CostEstimate(flops=flops, transcendentals=0,
                           bytes_accessed=bytes_accessed)

    kernel = functools.partial(_gcn_kernel, tile_k=tile_k)

    out = pl.pallas_call(
        kernel,
        out_shape=jax.ShapeDtypeStruct((n_pad_m, f_out), out_dtype),
        grid_spec=pltpu.PrefetchScalarGridSpec(
            num_scalar_prefetch=0,
            grid=grid,
            in_specs=[
                # A[row_tile, k_tile], int8.  (Bump to pipeline_mode=pl.Buffered(3)
                # only if a profile shows exposed DMA at K-tile boundaries.)
                pl.BlockSpec((tile_m, tile_k), lambda i, k: (i, k)),
                # XW fully VMEM-resident: fetched once, sliced in-kernel per K tile.
                pl.BlockSpec((n_pad_k, f_out), lambda i, k: (0, 0)),
                # bias resident.
                pl.BlockSpec((1, f_out), lambda i, k: (0, 0)),
            ],
            out_specs=pl.BlockSpec((tile_m, f_out), lambda i, k: (i, 0)),
            scratch_shapes=[pltpu.VMEM((tile_m, f_out), jnp.float32)],
        ),
        compiler_params=pltpu.CompilerParams(
            dimension_semantics=("parallel", "arbitrary"),
            vmem_limit_bytes=vmem_limit),
        cost_estimate=cost,
    )(adj_p, xw_p, b_p)

    # Slice off row / lane padding.
    return out[:N, :n_out]


if __name__ == "__main__":
    key = jax.random.PRNGKey(0)
    k_x, k_w, k_b, k_e = jax.random.split(key, 4)

    N = 256       # number of graph nodes
    n_in = 16     # input feature dim
    n_out = 32    # output feature dim

    # Node features.
    x = jax.random.normal(k_x, (N, n_in), dtype=jnp.float32)

    # Deterministic synthetic graph: ring edges + self loops + a few random edges.
    # A[dst, src] = 1.0 for each directed edge src -> dst.
    adj_np = np.zeros((N, N), dtype=np.float32)
    for i in range(N):
        adj_np[(i + 1) % N, i] = 1.0          # ring: i -> i+1
        adj_np[i, i] = 1.0                     # self loop
    extra_src = np.array(jax.random.randint(k_e, (N,), 0, N))
    for dst in range(N):
        adj_np[dst, int(extra_src[dst])] = 1.0
    adj = jnp.asarray(adj_np)

    # nn.Linear-style deterministic init: U(-1/sqrt(n_in), 1/sqrt(n_in)).
    bound = 1.0 / np.sqrt(n_in)
    weight = jax.random.uniform(k_w, (n_out, n_in), minval=-bound, maxval=bound,
                                dtype=jnp.float32)
    bias = jax.random.uniform(k_b, (n_out,), minval=-bound, maxval=bound,
                              dtype=jnp.float32)

    # One-time prepare (pad/cast A to int8, precompute XW) hoisted off the hot path.
    adj_p, xw_p, b_p, geom = gcn_prepare(adj, x, weight, bias,
                                         tile_m=512, tile_k=1024)

    out = gcn_forward(adj_p, xw_p, b_p, geom)
    out = jax.block_until_ready(out)

    # Pure numpy reference using exactly the XW values the kernel consumes
    # (A is 0/1, so the bf16 aggregation products are exact; both paths sum in f32).
    xw_bf = np.asarray(xw_p[:N, :n_out]).astype(np.float32)
    ref = np.maximum(adj_np @ xw_bf + np.asarray(bias), 0.0)
    np.testing.assert_allclose(np.asarray(out), ref, rtol=1e-4, atol=1e-4)

    print("KERNEL_OK")
</pallas_src>

<mosaic_0001>
module attributes {stable_mosaic.version = 11 : i64} {
  func.func @_gcn_kernel(%arg0: i32, %arg1: i32, %arg2: memref<256x256xi8, #tpu.memory_space<vmem>>, %arg3: memref<256x128xbf16, #tpu.memory_space<vmem>>, %arg4: memref<1x128xf32, #tpu.memory_space<vmem>>, %arg5: memref<256x128xf32, #tpu.memory_space<vmem>>, %arg6: memref<256x128xf32, #tpu.memory_space<vmem>>) attributes {dimension_semantics = [#tpu.dimension_semantics<parallel>, #tpu.dimension_semantics<arbitrary>], iteration_bounds = array<i64: 1, 1>, scalar_prefetch = 0 : i64, scratch_operands = 1 : i64, tpu.core_type = #tpu.core_type<tc>, window_params = [{transform_indices = @transform_0, window_bounds = array<i64: 256, 256>}, {pipeline_mode = #tpu.pipeline_mode<synchronous>, transform_indices = @transform_1, window_bounds = array<i64: 256, 128>}, {pipeline_mode = #tpu.pipeline_mode<synchronous>, transform_indices = @transform_2, window_bounds = array<i64: 1, 128>}, {transform_indices = @transform_3, window_bounds = array<i64: 256, 128>}]} {
    %c0_i32 = arith.constant 0 : i32
    %0 = arith.cmpi eq, %arg1, %c0_i32 : i32
    %1 = arith.extui %0 : i1 to i32
    %c0_i32_0 = arith.constant 0 : i32
    %2 = arith.cmpi ne, %1, %c0_i32_0 : i32
    scf.if %2 {
      %cst_9 = arith.constant 0.000000e+00 : f32
      %16 = vector.broadcast %cst_9 : f32 to vector<256x128xf32>
      %c0_10 = arith.constant 0 : index
      %c0_11 = arith.constant 0 : index
      %17 = vector.load %arg6[%c0_10, %c0_11] : memref<256x128xf32, #tpu.memory_space<vmem>>, vector<256x128xf32>
      tpu.vector_store %arg6[%c0_10, %c0_11], %16 {strides = array<i32>} : memref<256x128xf32, #tpu.memory_space<vmem>>, vector<256x128xf32>,
    } else {
    }
    %c0 = arith.constant 0 : index
    %c0_1 = arith.constant 0 : index
    %3 = vector.load %arg2[%c0, %c0_1] : memref<256x256xi8, #tpu.memory_space<vmem>>, vector<256x256xi8>
    %4 = arith.sitofp %3 : vector<256x256xi8> to vector<256x256xbf16>
    %c256_i32 = arith.constant 256 : i32
    %5 = arith.muli %arg1, %c256_i32 : i32
    %6 = tpu.assume_multiple %5, 128 : i32
    %7 = arith.index_cast %6 : i32 to index
    %c0_2 = arith.constant 0 : index
    %8 = vector.load %arg3[%7, %c0_2] : memref<256x128xbf16, #tpu.memory_space<vmem>>, vector<256x128xbf16>
    %c0_3 = arith.constant 0 : index
    %c0_4 = arith.constant 0 : index
    %9 = vector.load %arg6[%c0_3, %c0_4] : memref<256x128xf32, #tpu.memory_space<vmem>>, vector<256x128xf32>
    %cst = arith.constant dense<0.000000e+00> : vector<256x128xf32>
    %10 = tpu.matmul %4, %8, %cst {dimension_numbers = #tpu.dot_dimension_numbers<[1], [0], [0], [1], [0, 0, 1, 1], [], []>} : vector<256x256xbf16>, vector<256x128xbf16>, vector<256x128xf32> -> vector<256x128xf32>
    %11 = arith.addf %9, %10 : vector<256x128xf32>
    %c0_5 = arith.constant 0 : index
    %c0_6 = arith.constant 0 : index
    %12 = vector.load %arg6[%c0_5, %c0_6] : memref<256x128xf32, #tpu.memory_space<vmem>>, vector<256x128xf32>
    tpu.vector_store %arg6[%c0_5, %c0_6], %11 {strides = array<i32>} : memref<256x128xf32, #tpu.memory_space<vmem>>, vector<256x128xf32>,
    %c0_i32_7 = arith.constant 0 : i32
    %13 = arith.cmpi eq, %arg1, %c0_i32_7 : i32
    %14 = arith.extui %13 : i1 to i32
    %c0_i32_8 = arith.constant 0 : i32
    %15 = arith.cmpi ne, %14, %c0_i32_8 : i32
    scf.if %15 {
      %c0_9 = arith.constant 0 : index
      %c0_10 = arith.constant 0 : index
      %16 = vector.load %arg6[%c0_9, %c0_10] : memref<256x128xf32, #tpu.memory_space<vmem>>, vector<256x128xf32>
      %c0_11 = arith.constant 0 : index
      %c0_12 = arith.constant 0 : index
      %17 = vector.load %arg4[%c0_11, %c0_12] : memref<1x128xf32, #tpu.memory_space<vmem>>, vector<1x128xf32>
      %18 = vector.broadcast %17 : vector<1x128xf32> to vector<256x128xf32>
      %19 = arith.addf %16, %18 : vector<256x128xf32>
      %cst_13 = arith.constant 0.000000e+00 : f32
      %20 = vector.broadcast %cst_13 : f32 to vector<256x128xf32>
      %21 = arith.maximumf %19, %20 : vector<256x128xf32>
      %c0_14 = arith.constant 0 : index
      %c0_15 = arith.constant 0 : index
      %22 = vector.load %arg5[%c0_14, %c0_15] : memref<256x128xf32, #tpu.memory_space<vmem>>, vector<256x128xf32>
      tpu.vector_store %arg5[%c0_14, %c0_15], %21 {strides = array<i32>} : memref<256x128xf32, #tpu.memory_space<vmem>>, vector<256x128xf32>,
    } else {
    }
    return
  }
  func.func @transform_0(%arg0: i32, %arg1: i32) -> (i32, i32) {
    %c0_i32 = arith.constant 0 : i32
    return %arg0, %arg1 : i32, i32
  }
  func.func @transform_1(%arg0: i32, %arg1: i32) -> (i32, i32) {
    %c0_i32 = arith.constant 0 : i32
    %c0_i32_0 = arith.constant 0 : i32
    %c0_i32_1 = arith.constant 0 : i32
    return %c0_i32, %c0_i32_0 : i32, i32
  }
  func.func @transform_2(%arg0: i32, %arg1: i32) -> (i32, i32) {
    %c0_i32 = arith.constant 0 : i32
    %c0_i32_0 = arith.constant 0 : i32
    %c0_i32_1 = arith.constant 0 : i32
    return %c0_i32, %c0_i32_0 : i32, i32
  }
  func.func @transform_3(%arg0: i32, %arg1: i32) -> (i32, i32) {
    %c0_i32 = arith.constant 0 : i32
    %c0_i32_0 = arith.constant 0 : i32
    return %arg0, %c0_i32 : i32, i32
  }
}

</mosaic_0001>

<llo_original>
// kernel: tpu_custom_call.1
$region0: #{tpu_custom_call.1}
  #allocation0 [shape = 'u32[]', space=smem, size = 0x4, offset = 0x4, fixed_abs, tag = 'smem constant byte address 0x4 - core index']
  #allocation1 [shape = 'u32[144,128]{1,0:T(1,128)}', space=vmem, size = 0x12000, scoped, tag = 'internal scratch']
  #allocation2 [shape = 'f32[256,128]{1,0:T(8,128)}', space=vmem, size = 0x20000, scoped, tag = 'scratch operand']
  %s0 = inlined_call_operand.hbm [shape: s8[256,256], index: 0, kind: input, shape index: {}]
  %s1 = inlined_call_operand.hbm [shape: bf16[256,128], index: 1, kind: input, shape index: {}]
  %s2 = inlined_call_operand.vmem [shape: f32[1,128], index: 2, kind: input, shape index: {}]
  %s3 = inlined_call_operand.hbm [shape: f32[256,128], index: 3, kind: output, shape index: {}]
  %s4 = sld [smem:[#allocation0]]
  $region38: #{tpu_custom_call.1} parent=0
    _
  %s6 = ssub.s32 1, %s4
  %s7 = scalar_select 0, %s6, %s4
  $region1: #{tpu_custom_call.1} parent=0
    #allocation3 [shape = 'u8[65536]{0}', space=vmem, size = 0x10000, scoped, tag = 'input window, operand 0, single buffered']
    #allocation4 [shape = 's32[1]{0}', space=sflag, size = 0x4, scoped, tag = 'scoped memory for tpu_custom_call.1']
    #allocation5 [shape = 's32[1]{0}', space=sflag, size = 0x4, scoped, tag = 'scoped memory for tpu_custom_call.1']
    #allocation6 [shape = 'u8[65536]{0}', space=vmem, size = 0x10000, scoped, tag = 'input window, operand 1, single buffered']
    #allocation7 [shape = 's32[1]{0}', space=sflag, size = 0x4, scoped, tag = 'scoped memory for tpu_custom_call.1']
    #allocation8 [shape = 'u8[131072]{0}', space=vmem, size = 0x20000, scoped, tag = 'output window, operand 0, single buffered']
    %8 = vsyncpa [#allocation4], 0
    %9 = vsyncpa [#allocation7], 0
    %10 = vsyncpa [#allocation5], 0
    // Predicated region
    $region2: #{tpu_custom_call.1} parent=1 // pred_check
      _
    $region3: #{tpu_custom_call.1} parent=1 // pred_check_branch
      %12 = sbr.rel (0) target = $region5
    $region4: #{tpu_custom_call.1} parent=1 // pred_region
      %s14 = ssub.s32 2048, 2048
      %15 = vsyncadd [#allocation4], %s14
      %s16 = sshll.u32 [#allocation3], 4
      %s17 = int_to_ptr.vmem [resolvable:$true] %s16
      %22 = dma.hbm_to_vmem [thread:$0]  %s0, 2048, %s17, [#allocation4], 256, 256, 16
    $region5: #{tpu_custom_call.1} parent=1 // pred_fallthru
      _
    // Predicated region
    $region6: #{tpu_custom_call.1} parent=1 // pred_check
      _
    $region7: #{tpu_custom_call.1} parent=1 // pred_check_branch
      %24 = sbr.rel (0) target = $region9
    $region8: #{tpu_custom_call.1} parent=1 // pred_region
      %s26 = ssub.s32 2048, 2048
      %27 = vsyncadd [#allocation7], %s26
      %s28 = sshll.u32 [#allocation6], 4
      %s29 = int_to_ptr.vmem [resolvable:$true] %s28
      %34 = dma.hbm_to_vmem [thread:$0]  %s1, 2048, %s29, [#allocation7], 64, 64, 4
    $region9: #{tpu_custom_call.1} parent=1 // pred_fallthru
      _
    // Predicated region
    $region10: #{tpu_custom_call.1} parent=1 // pred_check
      _
    $region11: #{tpu_custom_call.1} parent=1 // pred_check_branch
      %36 = sbr.rel (0) target = $region13
    $region12: #{tpu_custom_call.1} parent=1 // pred_region
      _
    $region13: #{tpu_custom_call.1} parent=1 // pred_fallthru
      _
    // Predicated region
    $region14: #{tpu_custom_call.1} parent=1 // pred_check
      _
    $region15: #{tpu_custom_call.1} parent=1 // pred_check_branch
      %38 = sbr.rel (0) target = $region17
    $region16: #{tpu_custom_call.1} parent=1 // pred_region
      %39 = dma.done [#allocation4], 2048
    $region17: #{tpu_custom_call.1} parent=1 // pred_fallthru
      _
    // Predicated region
    $region18: #{tpu_custom_call.1} parent=1 // pred_check
      _
    $region19: #{tpu_custom_call.1} parent=1 // pred_check_branch
      %41 = sbr.rel (0) target = $region21
    $region20: #{tpu_custom_call.1} parent=1 // pred_region
      %42 = dma.done [#allocation7], 2048
    $region21: #{tpu_custom_call.1} parent=1 // pred_fallthru
      _
    %p44 = scmp.eq.s32.totalorder 0, 0
    // Predicated region
    $region22: #{tpu_custom_call.1} parent=1 // pred_check
      %p45 = pneg %p44
    $region23: #{tpu_custom_call.1} parent=1 // pred_check_branch
      %47 = sbr.rel (%p45) target = $region25
    $region24: #{tpu_custom_call.1} parent=1 // pred_region
      %48 = vst [vmem:[#allocation2] sm:$0xff] 0.0
      %49 = vst [vmem:[#allocation2 + $0x8] sm:$0xff] 0.0
      %50 = vst [vmem:[#allocation2 + $0x10] sm:$0xff] 0.0
      %51 = vst [vmem:[#allocation2 + $0x18] sm:$0xff] 0.0
      %52 = vst [vmem:[#allocation2 + $0x20] sm:$0xff] 0.0
      %53 = vst [vmem:[#allocation2 + $0x28] sm:$0xff] 0.0
      %54 = vst [vmem:[#allocation2 + $0x30] sm:$0xff] 0.0
      %55 = vst [vmem:[#allocation2 + $0x38] sm:$0xff] 0.0
      %56 = vst [vmem:[#allocation2 + $0x40] sm:$0xff] 0.0
      %57 = vst [vmem:[#allocation2 + $0x48] sm:$0xff] 0.0
      %58 = vst [vmem:[#allocation2 + $0x50] sm:$0xff] 0.0
      %59 = vst [vmem:[#allocation2 + $0x58] sm:$0xff] 0.0
      %60 = vst [vmem:[#allocation2 + $0x60] sm:$0xff] 0.0
      %61 = vst [vmem:[#allocation2 + $0x68] sm:$0xff] 0.0
      %62 = vst [vmem:[#allocation2 + $0x70] sm:$0xff] 0.0
      %63 = vst [vmem:[#allocation2 + $0x78] sm:$0xff] 0.0
      %64 = vst [vmem:[#allocation2 + $0x80] sm:$0xff] 0.0
      %65 = vst [vmem:[#allocation2 + $0x88] sm:$0xff] 0.0
      %66 = vst [vmem:[#allocation2 + $0x90] sm:$0xff] 0.0
      %67 = vst [vmem:[#allocation2 + $0x98] sm:$0xff] 0.0
      %68 = vst [vmem:[#allocation2 + $0xa0] sm:$0xff] 0.0
      %69 = vst [vmem:[#allocation2 + $0xa8] sm:$0xff] 0.0
      %70 = vst [vmem:[#allocation2 + $0xb0] sm:$0xff] 0.0
      %71 = vst [vmem:[#allocation2 + $0xb8] sm:$0xff] 0.0
      %72 = vst [vmem:[#allocation2 + $0xc0] sm:$0xff] 0.0
      %73 = vst [vmem:[#allocation2 + $0xc8] sm:$0xff] 0.0
      %74 = vst [vmem:[#allocation2 + $0xd0] sm:$0xff] 0.0
      %75 = vst [vmem:[#allocation2 + $0xd8] sm:$0xff] 0.0
      %76 = vst [vmem:[#allocation2 + $0xe0] sm:$0xff] 0.0
      %77 = vst [vmem:[#allocation2 + $0xe8] sm:$0xff] 0.0
      %78 = vst [vmem:[#allocation2 + $0xf0] sm:$0xff] 0.0
      %79 = vst [vmem:[#allocation2 + $0xf8] sm:$0xff] 0.0
    $region25: #{tpu_custom_call.1} parent=1 // pred_fallthru
      _
    %v80 = vld [vmem:[#allocation3] sm:$0xff]
    %v81 = vld [vmem:[#allocation3 + $0x8] sm:$0xff]
    %v82 = vld [vmem:[#allocation3 + $0x10] sm:$0xff]
    %v83 = vld [vmem:[#allocation3 + $0x18] sm:$0xff]
    %v84 = vld [vmem:[#allocation3 + $0x20] sm:$0xff]
    %v85 = vld [vmem:[#allocation3 + $0x28] sm:$0xff]
    %v86 = vld [vmem:[#allocation3 + $0x30] sm:$0xff]
    %v87 = vld [vmem:[#allocation3 + $0x38] sm:$0xff]
    %v88 = vld [vmem:[#allocation3 + $0x40] sm:$0xff]
    %v89 = vld [vmem:[#allocation3 + $0x48] sm:$0xff]
    %v90 = vld [vmem:[#allocation3 + $0x50] sm:$0xff]
    %v91 = vld [vmem:[#allocation3 + $0x58] sm:$0xff]
    %v92 = vld [vmem:[#allocation3 + $0x60] sm:$0xff]
    %v93 = vld [vmem:[#allocation3 + $0x68] sm:$0xff]
    %v94 = vld [vmem:[#allocation3 + $0x70] sm:$0xff]
    %v95 = vld [vmem:[#allocation3 + $0x78] sm:$0xff]
    %v96 = vunpack.c.l.s8.bf16 %v80
    %v97 = vunpack.c.l.s8.bf16 %v81
    %v98 = vunpack.c.h.s8.bf16 %v80
    %v99 = vunpack.c.h.s8.bf16 %v81
    %v100 = vunpack.c.l.s8.bf16 %v82
    %v101 = vunpack.c.l.s8.bf16 %v83
    %v102 = vunpack.c.h.s8.bf16 %v82
    %v103 = vunpack.c.h.s8.bf16 %v83
    %v104 = vunpack.c.l.s8.bf16 %v84
    %v105 = vunpack.c.l.s8.bf16 %v85
    %v106 = vunpack.c.h.s8.bf16 %v84
    %v107 = vunpack.c.h.s8.bf16 %v85
    %v108 = vunpack.c.l.s8.bf16 %v86
    %v109 = vunpack.c.l.s8.bf16 %v87
    %v110 = vunpack.c.h.s8.bf16 %v86
    %v111 = vunpack.c.h.s8.bf16 %v87
    %v112 = vunpack.c.l.s8.bf16 %v88
    %v113 = vunpack.c.l.s8.bf16 %v89
    %v114 = vunpack.c.h.s8.bf16 %v88
    %v115 = vunpack.c.h.s8.bf16 %v89
    %v116 = vunpack.c.l.s8.bf16 %v90
    %v117 = vunpack.c.l.s8.bf16 %v91
    %v118 = vunpack.c.h.s8.bf16 %v90
    %v119 = vunpack.c.h.s8.bf16 %v91
    %v120 = vunpack.c.l.s8.bf16 %v92
    %v121 = vunpack.c.l.s8.bf16 %v93
    %v122 = vunpack.c.h.s8.bf16 %v92
    %v123 = vunpack.c.h.s8.bf16 %v93
    %v124 = vunpack.c.l.s8.bf16 %v94
    %v125 = vunpack.c.l.s8.bf16 %v95
    %v126 = vunpack.c.h.s8.bf16 %v94
    %v127 = vunpack.c.h.s8.bf16 %v95
    %s128 = smul.u32 0, 256
    %s129 = sshra.s32 %s128, 3
    %s130 = sand.u32 %s128, 7
    %s131 = smul.addr %s129, 4
    %s132 = scalar_lea.vmem [#allocation6], %s131
    %v133 = vld [vmem:[%s132] sm:$0xf]
    %v134 = vld [vmem:[%s132 + $0x4] sm:$0xf]
    %v135 = vld [vmem:[%s132 + $0x8] sm:$0xf]
    %v136 = vld [vmem:[%s132 + $0xc] sm:$0xf]
    %v137 = vld [vmem:[%s132 + $0x10] sm:$0xf]
    %v138 = vld [vmem:[%s132 + $0x14] sm:$0xf]
    %v139 = vld [vmem:[%s132 + $0x18] sm:$0xf]
    %v140 = vld [vmem:[%s132 + $0x1c] sm:$0xf]
    %v141 = vld [vmem:[%s132 + $0x20] sm:$0xf]
    %v142 = vld [vmem:[%s132 + $0x24] sm:$0xf]
    %v143 = vld [vmem:[%s132 + $0x28] sm:$0xf]
    %v144 = vld [vmem:[%s132 + $0x2c] sm:$0xf]
    %v145 = vld [vmem:[%s132 + $0x30] sm:$0xf]
    %v146 = vld [vmem:[%s132 + $0x34] sm:$0xf]
    %v147 = vld [vmem:[%s132 + $0x38] sm:$0xf]
    %v148 = vld [vmem:[%s132 + $0x3c] sm:$0xf]
    %v149 = vld [vmem:[%s132 + $0x40] sm:$0xf]
    %v150 = vld [vmem:[%s132 + $0x44] sm:$0xf]
    %v151 = vld [vmem:[%s132 + $0x48] sm:$0xf]
    %v152 = vld [vmem:[%s132 + $0x4c] sm:$0xf]
    %v153 = vld [vmem:[%s132 + $0x50] sm:$0xf]
    %v154 = vld [vmem:[%s132 + $0x54] sm:$0xf]
    %v155 = vld [vmem:[%s132 + $0x58] sm:$0xf]
    %v156 = vld [vmem:[%s132 + $0x5c] sm:$0xf]
    %v157 = vld [vmem:[%s132 + $0x60] sm:$0xf]
    %v158 = vld [vmem:[%s132 + $0x64] sm:$0xf]
    %v159 = vld [vmem:[%s132 + $0x68] sm:$0xf]
    %v160 = vld [vmem:[%s132 + $0x6c] sm:$0xf]
    %v161 = vld [vmem:[%s132 + $0x70] sm:$0xf]
    %v162 = vld [vmem:[%s132 + $0x74] sm:$0xf]
    %v163 = vld [vmem:[%s132 + $0x78] sm:$0xf]
    %v164 = vld [vmem:[%s132 + $0x7c] sm:$0xf]
    %v165 = vld [vmem:[#allocation2] sm:$0xff]
    %v166 = vld [vmem:[#allocation2 + $0x8] sm:$0xff]
    %v167 = vld [vmem:[#allocation2 + $0x10] sm:$0xff]
    %v168 = vld [vmem:[#allocation2 + $0x18] sm:$0xff]
    %v169 = vld [vmem:[#allocation2 + $0x20] sm:$0xff]
    %v170 = vld [vmem:[#allocation2 + $0x28] sm:$0xff]
    %v171 = vld [vmem:[#allocation2 + $0x30] sm:$0xff]
    %v172 = vld [vmem:[#allocation2 + $0x38] sm:$0xff]
    %v173 = vld [vmem:[#allocation2 + $0x40] sm:$0xff]
    %v174 = vld [vmem:[#allocation2 + $0x48] sm:$0xff]
    %v175 = vld [vmem:[#allocation2 + $0x50] sm:$0xff]
    %v176 = vld [vmem:[#allocation2 + $0x58] sm:$0xff]
    %v177 = vld [vmem:[#allocation2 + $0x60] sm:$0xff]
    %v178 = vld [vmem:[#allocation2 + $0x68] sm:$0xff]
    %v179 = vld [vmem:[#allocation2 + $0x70] sm:$0xff]
    %v180 = vld [vmem:[#allocation2 + $0x78] sm:$0xff]
    %v181 = vld [vmem:[#allocation2 + $0x80] sm:$0xff]
    %v182 = vld [vmem:[#allocation2 + $0x88] sm:$0xff]
    %v183 = vld [vmem:[#allocation2 + $0x90] sm:$0xff]
    %v184 = vld [vmem:[#allocation2 + $0x98] sm:$0xff]
    %v185 = vld [vmem:[#allocation2 + $0xa0] sm:$0xff]
    %v186 = vld [vmem:[#allocation2 + $0xa8] sm:$0xff]
    %v187 = vld [vmem:[#allocation2 + $0xb0] sm:$0xff]
    %v188 = vld [vmem:[#allocation2 + $0xb8] sm:$0xff]
    %v189 = vld [vmem:[#allocation2 + $0xc0] sm:$0xff]
    %v190 = vld [vmem:[#allocation2 + $0xc8] sm:$0xff]
    %v191 = vld [vmem:[#allocation2 + $0xd0] sm:$0xff]
    %v192 = vld [vmem:[#allocation2 + $0xd8] sm:$0xff]
    %v193 = vld [vmem:[#allocation2 + $0xe0] sm:$0xff]
    %v194 = vld [vmem:[#allocation2 + $0xe8] sm:$0xff]
    %v195 = vld [vmem:[#allocation2 + $0xf0] sm:$0xff]
    %v196 = vld [vmem:[#allocation2 + $0xf8] sm:$0xff]
    %v229 = vunpack.c.l.b16 %v133
    %v230 = vunpack.c.l.b16 %v134
    %v231 = vunpack.c.l.b16 %v135
    %v232 = vunpack.c.l.b16 %v136
    %v233 = vunpack.c.l.b16 %v137
    %v234 = vunpack.c.l.b16 %v138
    %v235 = vunpack.c.l.b16 %v139
    %v236 = vunpack.c.l.b16 %v140
    %v237 = vunpack.c.l.b16 %v141
    %v238 = vunpack.c.l.b16 %v142
    %v239 = vunpack.c.l.b16 %v143
    %v240 = vunpack.c.l.b16 %v144
    %v241 = vunpack.c.l.b16 %v145
    %v242 = vunpack.c.l.b16 %v146
    %v243 = vunpack.c.l.b16 %v147
    %v244 = vunpack.c.l.b16 %v148
    %v245 = vunpack.c.l.b16 %v149
    %v246 = vunpack.c.l.b16 %v150
    %v247 = vunpack.c.l.b16 %v151
    %v248 = vunpack.c.l.b16 %v152
    %v249 = vunpack.c.l.b16 %v153
    %v250 = vunpack.c.l.b16 %v154
    %v251 = vunpack.c.l.b16 %v155
    %v252 = vunpack.c.l.b16 %v156
    %v253 = vunpack.c.l.b16 %v157
    %v254 = vunpack.c.l.b16 %v158
    %v255 = vunpack.c.l.b16 %v159
    %v256 = vunpack.c.l.b16 %v160
    %v257 = vunpack.c.l.b16 %v161
    %v258 = vunpack.c.l.b16 %v162
    %v259 = vunpack.c.l.b16 %v163
    %v260 = vunpack.c.l.b16 %v164
    %v261 = vpack.c.b16 %v230, %v229
    %v262 = vpack.c.b16 %v232, %v231
    %v263 = vpack.c.b16 %v234, %v233
    %v264 = vpack.c.b16 %v236, %v235
    %v265 = vpack.c.b16 %v238, %v237
    %v266 = vpack.c.b16 %v240, %v239
    %v267 = vpack.c.b16 %v242, %v241
    %v268 = vpack.c.b16 %v244, %v243
    %v269 = vpack.c.b16 %v246, %v245
    %v270 = vpack.c.b16 %v248, %v247
    %v271 = vpack.c.b16 %v250, %v249
    %v272 = vpack.c.b16 %v252, %v251
    %v273 = vpack.c.b16 %v254, %v253
    %v274 = vpack.c.b16 %v256, %v255
    %v275 = vpack.c.b16 %v258, %v257
    %v276 = vpack.c.b16 %v260, %v259
    %293 = vmatprep.subr.bf16.mxu0 0
    %294 = vmatpush1.bf16.msra.mxu0 %v261
    %295 = vmatprep.subr.bf16.mxu0 0
    %296 = vmatpush1.bf16.msra.mxu0 %v262
    %297 = vmatprep.subr.bf16.mxu0 0
    %298 = vmatpush1.bf16.msra.mxu0 %v263
    %299 = vmatprep.subr.bf16.mxu0 0
    %300 = vmatpush1.bf16.msra.mxu0 %v264
    %301 = vmatprep.subr.bf16.mxu0 0
    %302 = vmatpush1.bf16.msra.mxu0 %v265
    %303 = vmatprep.subr.bf16.mxu0 0
    %304 = vmatpush1.bf16.msra.mxu0 %v266
    %305 = vmatprep.subr.bf16.mxu0 0
    %306 = vmatpush1.bf16.msra.mxu0 %v267
    %307 = vmatprep.subr.bf16.mxu0 0
    %308 = vmatpush1.bf16.msra.mxu0 %v268
    %309 = vmatprep.subr.bf16.mxu0 0
    %310 = vmatpush1.bf16.msra.mxu0 %v269
    %311 = vmatprep.subr.bf16.mxu0 0
    %312 = vmatpush1.bf16.msra.mxu0 %v270
    %313 = vmatprep.subr.bf16.mxu0 0
    %314 = vmatpush1.bf16.msra.mxu0 %v271
    %315 = vmatprep.subr.bf16.mxu0 0
    %316 = vmatpush1.bf16.msra.mxu0 %v272
    %317 = vmatprep.subr.bf16.mxu0 0
    %318 = vmatpush1.bf16.msra.mxu0 %v273
    %319 = vmatprep.subr.bf16.mxu0 0
    %320 = vmatpush1.bf16.msra.mxu0 %v274
    %321 = vmatprep.subr.bf16.mxu0 0
    %322 = vmatpush1.bf16.msra.mxu0 %v275
    %323 = vmatprep.subr.bf16.mxu0 0
    %324 = vmatpush1.bf16.msra.mxu0 %v276
    %325 = vmatprep.mubr.bf16.mxu0 %v97
    %326 = vmatmul.mubr.bf16.gmra.mrb[0].mxu0 %v96
    %v327 = vpop.f32.mrb[0].mxu0
    %v328 = vadd.f32 0.0, %v327
    %v329 = vpop.f32.mrb[0].mxu0
    %v330 = vpop.f32.mrb[0].mxu0
    %v331 = vadd.f32 0.0, %v330
    %v332 = vpop.f32.mrb[0].mxu0
    %333 = vmatprep.mubr.bf16.mxu0 %v99
    %334 = vmatmul.mubr.bf16.gmra.mrb[0].mxu0 %v98
    %v335 = vpop.f32.mrb[0].mxu0
    %v336 = vadd.f32 0.0, %v335
    %v337 = vpop.f32.mrb[0].mxu0
    %v338 = vpop.f32.mrb[0].mxu0
    %v339 = vadd.f32 0.0, %v338
    %v340 = vpop.f32.mrb[0].mxu0
    %341 = vmatprep.mubr.bf16.mxu0 %v101
    %342 = vmatmul.mubr.bf16.gmra.mrb[0].mxu0 %v100
    %v343 = vpop.f32.mrb[0].mxu0
    %v344 = vadd.f32 0.0, %v343
    %v345 = vpop.f32.mrb[0].mxu0
    %v346 = vpop.f32.mrb[0].mxu0
    %v347 = vadd.f32 0.0, %v346
    %v348 = vpop.f32.mrb[0].mxu0
    %349 = vmatprep.mubr.bf16.mxu0 %v103
    %350 = vmatmul.mubr.bf16.gmra.mrb[0].mxu0 %v102
    %v351 = vpop.f32.mrb[0].mxu0
    %v352 = vadd.f32 0.0, %v351
    %v353 = vpop.f32.mrb[0].mxu0
    %v354 = vpop.f32.mrb[0].mxu0
    %v355 = vadd.f32 0.0, %v354
    %v356 = vpop.f32.mrb[0].mxu0
    %357 = vmatprep.mubr.bf16.mxu0 %v105
    %358 = vmatmul.mubr.bf16.gmra.mrb[0].mxu0 %v104
    %v359 = vpop.f32.mrb[0].mxu0
    %v360 = vadd.f32 0.0, %v359
    %v361 = vpop.f32.mrb[0].mxu0
    %v362 = vpop.f32.mrb[0].mxu0
    %v363 = vadd.f32 0.0, %v362
    %v364 = vpop.f32.mrb[0].mxu0
    %365 = vmatprep.mubr.bf16.mxu0 %v107
    %366 = vmatmul.mubr.bf16.gmra.mrb[0].mxu0 %v106
    %v367 = vpop.f32.mrb[0].mxu0
    %v368 = vadd.f32 0.0, %v367
    %v369 = vpop.f32.mrb[0].mxu0
    %v370 = vpop.f32.mrb[0].mxu0
    %v371 = vadd.f32 0.0, %v370
    %v372 = vpop.f32.mrb[0].mxu0
    %373 = vmatprep.mubr.bf16.mxu0 %v109
    %374 = vmatmul.mubr.bf16.gmra.mrb[0].mxu0 %v108
    %v375 = vpop.f32.mrb[0].mxu0
    %v376 = vadd.f32 0.0, %v375
    %v377 = vpop.f32.mrb[0].mxu0
    %v378 = vpop.f32.mrb[0].mxu0
    %v379 = vadd.f32 0.0, %v378
    %v380 = vpop.f32.mrb[0].mxu0
    %381 = vmatprep.mubr.bf16.mxu0 %v111
    %382 = vmatmul.mubr.bf16.gmra.mrb[0].mxu0 %v110
    %v383 = vpop.f32.mrb[0].mxu0
    %v384 = vadd.f32 0.0, %v383
    %v385 = vpop.f32.mrb[0].mxu0
    %v386 = vpop.f32.mrb[0].mxu0
    %v387 = vadd.f32 0.0, %v386
    %v388 = vpop.f32.mrb[0].mxu0
    %389 = vmatprep.mubr.bf16.mxu0 %v113
    %390 = vmatmul.mubr.bf16.gmra.mrb[0].mxu0 %v112
    %v391 = vpop.f32.mrb[0].mxu0
    %v392 = vadd.f32 0.0, %v391
    %v393 = vpop.f32.mrb[0].mxu0
    %v394 = vpop.f32.mrb[0].mxu0
    %v395 = vadd.f32 0.0, %v394
    %v396 = vpop.f32.mrb[0].mxu0
    %397 = vmatprep.mubr.bf16.mxu0 %v115
    %398 = vmatmul.mubr.bf16.gmra.mrb[0].mxu0 %v114
    %v399 = vpop.f32.mrb[0].mxu0
    %v400 = vadd.f32 0.0, %v399
    %v401 = vpop.f32.mrb[0].mxu0
    %v402 = vpop.f32.mrb[0].mxu0
    %v403 = vadd.f32 0.0, %v402
    %v404 = vpop.f32.mrb[0].mxu0
    %405 = vmatprep.mubr.bf16.mxu0 %v117
    %406 = vmatmul.mubr.bf16.gmra.mrb[0].mxu0 %v116
    %v407 = vpop.f32.mrb[0].mxu0
    %v408 = vadd.f32 0.0, %v407
    %v409 = vpop.f32.mrb[0].mxu0
    %v410 = vpop.f32.mrb[0].mxu0
    %v411 = vadd.f32 0.0, %v410
    %v412 = vpop.f32.mrb[0].mxu0
    %413 = vmatprep.mubr.bf16.mxu0 %v119
    %414 = vmatmul.mubr.bf16.gmra.mrb[0].mxu0 %v118
    %v415 = vpop.f32.mrb[0].mxu0
    %v416 = vadd.f32 0.0, %v415
    %v417 = vpop.f32.mrb[0].mxu0
    %v418 = vpop.f32.mrb[0].mxu0
    %v419 = vadd.f32 0.0, %v418
    %v420 = vpop.f32.mrb[0].mxu0
    %421 = vmatprep.mubr.bf16.mxu0 %v121
    %422 = vmatmul.mubr.bf16.gmra.mrb[0].mxu0 %v120
    %v423 = vpop.f32.mrb[0].mxu0
    %v424 = vadd.f32 0.0, %v423
    %v425 = vpop.f32.mrb[0].mxu0
    %v426 = vpop.f32.mrb[0].mxu0
    %v427 = vadd.f32 0.0, %v426
    %v428 = vpop.f32.mrb[0].mxu0
    %429 = vmatprep.mubr.bf16.mxu0 %v123
    %430 = vmatmul.mubr.bf16.gmra.mrb[0].mxu0 %v122
    %v431 = vpop.f32.mrb[0].mxu0
    %v432 = vadd.f32 0.0, %v431
    %v433 = vpop.f32.mrb[0].mxu0
    %v434 = vpop.f32.mrb[0].mxu0
    %v435 = vadd.f32 0.0, %v434
    %v436 = vpop.f32.mrb[0].mxu0
    %437 = vmatprep.mubr.bf16.mxu0 %v125
    %438 = vmatmul.mubr.bf16.gmra.mrb[0].mxu0 %v124
    %v439 = vpop.f32.mrb[0].mxu0
    %v440 = vadd.f32 0.0, %v439
    %v441 = vpop.f32.mrb[0].mxu0
    %v442 = vpop.f32.mrb[0].mxu0
    %v443 = vadd.f32 0.0, %v442
    %v444 = vpop.f32.mrb[0].mxu0
    %445 = vmatprep.mubr.bf16.mxu0 %v127
    %446 = vmatmul.mubr.bf16.gmra.mrb[0].mxu0 %v126
    %v447 = vpop.f32.mrb[0].mxu0
    %v448 = vadd.f32 0.0, %v447
    %v449 = vpop.f32.mrb[0].mxu0
    %v450 = vpop.f32.mrb[0].mxu0
    %v451 = vadd.f32 0.0, %v450
    %v452 = vpop.f32.mrb[0].mxu0
    %453 = vdwg.mxu0
    %v454 = vadd.f32 %v165, %v328
    %v455 = vadd.f32 %v166, %v331
    %v456 = vadd.f32 %v167, %v336
    %v457 = vadd.f32 %v168, %v339
    %v458 = vadd.f32 %v169, %v344
    %v459 = vadd.f32 %v170, %v347
    %v460 = vadd.f32 %v171, %v352
    %v461 = vadd.f32 %v172, %v355
    %v462 = vadd.f32 %v173, %v360
    %v463 = vadd.f32 %v174, %v363
    %v464 = vadd.f32 %v175, %v368
    %v465 = vadd.f32 %v176, %v371
    %v466 = vadd.f32 %v177, %v376
    %v467 = vadd.f32 %v178, %v379
    %v468 = vadd.f32 %v179, %v384
    %v469 = vadd.f32 %v180, %v387
    %v470 = vadd.f32 %v181, %v392
    %v471 = vadd.f32 %v182, %v395
    %v472 = vadd.f32 %v183, %v400
    %v473 = vadd.f32 %v184, %v403
    %v474 = vadd.f32 %v185, %v408
    %v475 = vadd.f32 %v186, %v411
    %v476 = vadd.f32 %v187, %v416
    %v477 = vadd.f32 %v188, %v419
    %v478 = vadd.f32 %v189, %v424
    %v479 = vadd.f32 %v190, %v427
    %v480 = vadd.f32 %v191, %v432
    %v481 = vadd.f32 %v192, %v435
    %v482 = vadd.f32 %v193, %v440
    %v483 = vadd.f32 %v194, %v443
    %v484 = vadd.f32 %v195, %v448
    %v485 = vadd.f32 %v196, %v451
    %486 = vst [vmem:[#allocation2] sm:$0xff] %v454
    %487 = vst [vmem:[#allocation2 + $0x8] sm:$0xff] %v455
    %488 = vst [vmem:[#allocation2 + $0x10] sm:$0xff] %v456
    %489 = vst [vmem:[#allocation2 + $0x18] sm:$0xff] %v457
    %490 = vst [vmem:[#allocation2 + $0x20] sm:$0xff] %v458
    %491 = vst [vmem:[#allocation2 + $0x28] sm:$0xff] %v459
    %492 = vst [vmem:[#allocation2 + $0x30] sm:$0xff] %v460
    %493 = vst [vmem:[#allocation2 + $0x38] sm:$0xff] %v461
    %494 = vst [vmem:[#allocation2 + $0x40] sm:$0xff] %v462
    %495 = vst [vmem:[#allocation2 + $0x48] sm:$0xff] %v463
    %496 = vst [vmem:[#allocation2 + $0x50] sm:$0xff] %v464
    %497 = vst [vmem:[#allocation2 + $0x58] sm:$0xff] %v465
    %498 = vst [vmem:[#allocation2 + $0x60] sm:$0xff] %v466
    %499 = vst [vmem:[#allocation2 + $0x68] sm:$0xff] %v467
    %500 = vst [vmem:[#allocation2 + $0x70] sm:$0xff] %v468
    %501 = vst [vmem:[#allocation2 + $0x78] sm:$0xff] %v469
    %502 = vst [vmem:[#allocation2 + $0x80] sm:$0xff] %v470
    %503 = vst [vmem:[#allocation2 + $0x88] sm:$0xff] %v471
    %504 = vst [vmem:[#allocation2 + $0x90] sm:$0xff] %v472
    %505 = vst [vmem:[#allocation2 + $0x98] sm:$0xff] %v473
    %506 = vst [vmem:[#allocation2 + $0xa0] sm:$0xff] %v474
    %507 = vst [vmem:[#allocation2 + $0xa8] sm:$0xff] %v475
    %508 = vst [vmem:[#allocation2 + $0xb0] sm:$0xff] %v476
    %509 = vst [vmem:[#allocation2 + $0xb8] sm:$0xff] %v477
    %510 = vst [vmem:[#allocation2 + $0xc0] sm:$0xff] %v478
    %511 = vst [vmem:[#allocation2 + $0xc8] sm:$0xff] %v479
    %512 = vst [vmem:[#allocation2 + $0xd0] sm:$0xff] %v480
    %513 = vst [vmem:[#allocation2 + $0xd8] sm:$0xff] %v481
    %514 = vst [vmem:[#allocation2 + $0xe0] sm:$0xff] %v482
    %515 = vst [vmem:[#allocation2 + $0xe8] sm:$0xff] %v483
    %516 = vst [vmem:[#allocation2 + $0xf0] sm:$0xff] %v484
    %517 = vst [vmem:[#allocation2 + $0xf8] sm:$0xff] %v485
    // Predicated region
    $region26: #{tpu_custom_call.1} parent=1 // pred_check
      %p518 = pneg %p44
    $region27: #{tpu_custom_call.1} parent=1 // pred_check_branch
      %520 = sbr.rel (%p518) target = $region29
    $region28: #{tpu_custom_call.1} parent=1 // pred_region
      %v521 = vld [vmem:[#allocation2] sm:$0xff]
      %v522 = vld [vmem:[#allocation2 + $0x8] sm:$0xff]
      %v523 = vld [vmem:[#allocation2 + $0x10] sm:$0xff]
      %v524 = vld [vmem:[#allocation2 + $0x18] sm:$0xff]
      %v525 = vld [vmem:[#allocation2 + $0x20] sm:$0xff]
      %v526 = vld [vmem:[#allocation2 + $0x28] sm:$0xff]
      %v527 = vld [vmem:[#allocation2 + $0x30] sm:$0xff]
      %v528 = vld [vmem:[#allocation2 + $0x38] sm:$0xff]
      %v529 = vld [vmem:[#allocation2 + $0x40] sm:$0xff]
      %v530 = vld [vmem:[#allocation2 + $0x48] sm:$0xff]
      %v531 = vld [vmem:[#allocation2 + $0x50] sm:$0xff]
      %v532 = vld [vmem:[#allocation2 + $0x58] sm:$0xff]
      %v533 = vld [vmem:[#allocation2 + $0x60] sm:$0xff]
      %v534 = vld [vmem:[#allocation2 + $0x68] sm:$0xff]
      %v535 = vld [vmem:[#allocation2 + $0x70] sm:$0xff]
      %v536 = vld [vmem:[#allocation2 + $0x78] sm:$0xff]
      %v537 = vld [vmem:[#allocation2 + $0x80] sm:$0xff]
      %v538 = vld [vmem:[#allocation2 + $0x88] sm:$0xff]
      %v539 = vld [vmem:[#allocation2 + $0x90] sm:$0xff]
      %v540 = vld [vmem:[#allocation2 + $0x98] sm:$0xff]
      %v541 = vld [vmem:[#allocation2 + $0xa0] sm:$0xff]
      %v542 = vld [vmem:[#allocation2 + $0xa8] sm:$0xff]
      %v543 = vld [vmem:[#allocation2 + $0xb0] sm:$0xff]
      %v544 = vld [vmem:[#allocation2 + $0xb8] sm:$0xff]
      %v545 = vld [vmem:[#allocation2 + $0xc0] sm:$0xff]
      %v546 = vld [vmem:[#allocation2 + $0xc8] sm:$0xff]
      %v547 = vld [vmem:[#allocation2 + $0xd0] sm:$0xff]
      %v548 = vld [vmem:[#allocation2 + $0xd8] sm:$0xff]
      %v549 = vld [vmem:[#allocation2 + $0xe0] sm:$0xff]
      %v550 = vld [vmem:[#allocation2 + $0xe8] sm:$0xff]
      %v551 = vld [vmem:[#allocation2 + $0xf0] sm:$0xff]
      %v552 = vld [vmem:[#allocation2 + $0xf8] sm:$0xff]
      %v553 = vld [vmem:[%s2] sm:$0x1]
      %v555 = vlaneseq
      %v556 = vshrl.u32 %v555, 7
      %v557 = vsub.s32 0, %v556
      %v558 = vrot.slane %v553, %v557
      %v560 = vadd.f32 %v521, %v558
      %v561 = vadd.f32 %v522, %v558
      %v562 = vadd.f32 %v523, %v558
      %v563 = vadd.f32 %v524, %v558
      %v564 = vadd.f32 %v525, %v558
      %v565 = vadd.f32 %v526, %v558
      %v566 = vadd.f32 %v527, %v558
      %v567 = vadd.f32 %v528, %v558
      %v568 = vadd.f32 %v529, %v558
      %v569 = vadd.f32 %v530, %v558
      %v570 = vadd.f32 %v531, %v558
      %v571 = vadd.f32 %v532, %v558
      %v572 = vadd.f32 %v533, %v558
      %v573 = vadd.f32 %v534, %v558
      %v574 = vadd.f32 %v535, %v558
      %v575 = vadd.f32 %v536, %v558
      %v576 = vadd.f32 %v537, %v558
      %v577 = vadd.f32 %v538, %v558
      %v578 = vadd.f32 %v539, %v558
      %v579 = vadd.f32 %v540, %v558
      %v580 = vadd.f32 %v541, %v558
      %v581 = vadd.f32 %v542, %v558
      %v582 = vadd.f32 %v543, %v558
      %v583 = vadd.f32 %v544, %v558
      %v584 = vadd.f32 %v545, %v558
      %v585 = vadd.f32 %v546, %v558
      %v586 = vadd.f32 %v547, %v558
      %v587 = vadd.f32 %v548, %v558
      %v588 = vadd.f32 %v549, %v558
      %v589 = vadd.f32 %v550, %v558
      %v590 = vadd.f32 %v551, %v558
      %v591 = vadd.f32 %v552, %v558
      %v592 = vmax.f32 %v560, 0.0
      %v593 = vmax.f32 %v561, 0.0
      %v594 = vmax.f32 %v562, 0.0
      %v595 = vmax.f32 %v563, 0.0
      %v596 = vmax.f32 %v564, 0.0
      %v597 = vmax.f32 %v565, 0.0
      %v598 = vmax.f32 %v566, 0.0
      %v599 = vmax.f32 %v567, 0.0
      %v600 = vmax.f32 %v568, 0.0
      %v601 = vmax.f32 %v569, 0.0
      %v602 = vmax.f32 %v570, 0.0
      %v603 = vmax.f32 %v571, 0.0
      %v604 = vmax.f32 %v572, 0.0
      %v605 = vmax.f32 %v573, 0.0
      %v606 = vmax.f32 %v574, 0.0
      %v607 = vmax.f32 %v575, 0.0
      %v608 = vmax.f32 %v576, 0.0
      %v609 = vmax.f32 %v577, 0.0
      %v610 = vmax.f32 %v578, 0.0
      %v611 = vmax.f32 %v579, 0.0
      %v612 = vmax.f32 %v580, 0.0
      %v613 = vmax.f32 %v581, 0.0
      %v614 = vmax.f32 %v582, 0.0
      %v615 = vmax.f32 %v583, 0.0
      %v616 = vmax.f32 %v584, 0.0
      %v617 = vmax.f32 %v585, 0.0
      %v618 = vmax.f32 %v586, 0.0
      %v619 = vmax.f32 %v587, 0.0
      %v620 = vmax.f32 %v588, 0.0
      %v621 = vmax.f32 %v589, 0.0
      %v622 = vmax.f32 %v590, 0.0
      %v623 = vmax.f32 %v591, 0.0
      %624 = vst [vmem:[#allocation8] sm:$0xff] %v592
      %625 = vst [vmem:[#allocation8 + $0x8] sm:$0xff] %v593
      %626 = vst [vmem:[#allocation8 + $0x10] sm:$0xff] %v594
      %627 = vst [vmem:[#allocation8 + $0x18] sm:$0xff] %v595
      %628 = vst [vmem:[#allocation8 + $0x20] sm:$0xff] %v596
      %629 = vst [vmem:[#allocation8 + $0x28] sm:$0xff] %v597
      %630 = vst [vmem:[#allocation8 + $0x30] sm:$0xff] %v598
      %631 = vst [vmem:[#allocation8 + $0x38] sm:$0xff] %v599
      %632 = vst [vmem:[#allocation8 + $0x40] sm:$0xff] %v600
      %633 = vst [vmem:[#allocation8 + $0x48] sm:$0xff] %v601
      %634 = vst [vmem:[#allocation8 + $0x50] sm:$0xff] %v602
      %635 = vst [vmem:[#allocation8 + $0x58] sm:$0xff] %v603
      %636 = vst [vmem:[#allocation8 + $0x60] sm:$0xff] %v604
      %637 = vst [vmem:[#allocation8 + $0x68] sm:$0xff] %v605
      %638 = vst [vmem:[#allocation8 + $0x70] sm:$0xff] %v606
      %639 = vst [vmem:[#allocation8 + $0x78] sm:$0xff] %v607
      %640 = vst [vmem:[#allocation8 + $0x80] sm:$0xff] %v608
      %641 = vst [vmem:[#allocation8 + $0x88] sm:$0xff] %v609
      %642 = vst [vmem:[#allocation8 + $0x90] sm:$0xff] %v610
      %643 = vst [vmem:[#allocation8 + $0x98] sm:$0xff] %v611
      %644 = vst [vmem:[#allocation8 + $0xa0] sm:$0xff] %v612
      %645 = vst [vmem:[#allocation8 + $0xa8] sm:$0xff] %v613
      %646 = vst [vmem:[#allocation8 + $0xb0] sm:$0xff] %v614
      %647 = vst [vmem:[#allocation8 + $0xb8] sm:$0xff] %v615
      %648 = vst [vmem:[#allocation8 + $0xc0] sm:$0xff] %v616
      %649 = vst [vmem:[#allocation8 + $0xc8] sm:$0xff] %v617
      %650 = vst [vmem:[#allocation8 + $0xd0] sm:$0xff] %v618
      %651 = vst [vmem:[#allocation8 + $0xd8] sm:$0xff] %v619
      %652 = vst [vmem:[#allocation8 + $0xe0] sm:$0xff] %v620
      %653 = vst [vmem:[#allocation8 + $0xe8] sm:$0xff] %v621
      %654 = vst [vmem:[#allocation8 + $0xf0] sm:$0xff] %v622
      %655 = vst [vmem:[#allocation8 + $0xf8] sm:$0xff] %v623
    $region29: #{tpu_custom_call.1} parent=1 // pred_fallthru
      _
    // Predicated region
    $region30: #{tpu_custom_call.1} parent=1 // pred_check
      _
    $region31: #{tpu_custom_call.1} parent=1 // pred_check_branch
      %657 = sbr.rel (0) target = $region33
    $region32: #{tpu_custom_call.1} parent=1 // pred_region
      %s659 = ssub.s32 4096, 4096
      %660 = vsyncadd [#allocation5], %s659
      %s661 = sshll.u32 [#allocation8], 4
      %s662 = int_to_ptr.vmem [resolvable:$true] %s661
      %667 = dma.vmem_to_hbm [thread:$0]  %s662, 4096, %s3, [#allocation5], 128, 128, 8
    $region33: #{tpu_custom_call.1} parent=1 // pred_fallthru
      _
    // Predicated region
    $region34: #{tpu_custom_call.1} parent=1 // pred_check
      _
    $region35: #{tpu_custom_call.1} parent=1 // pred_check_branch
      %669 = sbr.rel (0) target = $region37
    $region36: #{tpu_custom_call.1} parent=1 // pred_region
      %670 = dma.done [#allocation5], 4096
    $region37: #{tpu_custom_call.1} parent=1 // pred_fallthru
      _
    %671 = vsyncpa [#allocation4], 1
    %672 = vsyncpa [#allocation7], 1
    %673 = vsyncpa [#allocation5], 1

</llo_original>
